<compile_context>
chip_gen: v5e
topology: v5e:2x2
jax: 0.10.0
libtpu: 0.0.40
codegen_flags: <defaults>
</compile_context>

<pallas_src>
import functools

import jax
import jax.numpy as jnp
from jax.experimental import pallas as pl
from jax.experimental.pallas import tpu as pltpu


def _cdiv(a, b):
    return -(-a // b)


def _round_up(x, m):
    return _cdiv(x, m) * m


@functools.lru_cache(maxsize=1)
def _tensorcores_per_chip():
    """2 for dual-TensorCore chips (v4/v5p megacore, v7x), else 1."""
    try:
        kind = jax.devices()[0].device_kind.lower()
    except Exception:  # pragma: no cover - conservative fallback
        return 1
    for tag in ("v4", "v5p", "v7"):
        if tag in kind:
            return 2
    return 1


def _pick_bm(B, block_b, n_tc, sub):
    """Batch-tile size.

    Single-TC chips (v5e/v6e): one grid step if the batch fits in block_b
    (per-step overhead dominates this tiny net).  Dual-TC chips (v7x): at
    least 2 and preferably an even number of steps so both cores get balanced
    work.  `sub` is the sublane tile (8 for f32, 16 for bf16); a block equal
    to the full batch dim is always layout-legal regardless of `sub`.
    """
    want_split = n_tc >= 2 and B > sub
    if B <= block_b and not want_split:
        return B
    target = 2 if want_split else 1
    bm = min(_round_up(block_b, sub), _round_up(_cdiv(B, target), sub))
    steps = _cdiv(B, bm)
    if n_tc >= 2 and steps > 1 and steps % 2:
        bm_even = _round_up(_cdiv(B, steps + 1), sub)
        if _cdiv(B, bm_even) % 2 == 0:
            bm = bm_even
    return max(bm, sub)


def _qnet_duel_kernel(
    x_ref,                    # (bm, S)   compute dtype (bf16 by default)
    w1_ref, b1_ref,           # head L1:  (S, M) cdt, (1, M) f32
    w2_ref, b2_ref,           # head L2:  (M, M) cdt, (1, M) f32
    wva1_ref, bva1_ref,       # fused val/adv L1: (M, 2M) cdt, (1, 2M) f32
    wq_ref, bq_ref,           # folded last layer + dueling combine: (2M, A) cdt, (1, A) f32
    q_ref,                    # output: (bm, A) f32
):
    dt = x_ref.dtype

    # ---- head: Linear -> ReLU -> Linear -> ReLU (f32 accumulate/bias) ----
    h = jnp.dot(x_ref[...], w1_ref[...], preferred_element_type=jnp.float32) + b1_ref[...]
    h = jnp.maximum(h, 0.0).astype(dt)
    h = jnp.dot(h, w2_ref[...], preferred_element_type=jnp.float32) + b2_ref[...]
    h = jnp.maximum(h, 0.0).astype(dt)

    # ---- fused value|advantage hidden layer: one (M, 2M) matmul + ReLU ----
    va = jnp.dot(h, wva1_ref[...], preferred_element_type=jnp.float32) + bva1_ref[...]
    va = jnp.maximum(va, 0.0).astype(dt)            # (bm, 2M) = [val_hidden | adv_hidden]

    # ---- last layer with the dueling combine pre-folded into (wq, bq) ----
    # q = val + adv - adv.mean(-1, keepdims=True), stored directly (no epilogue).
    q_ref[...] = (
        jnp.dot(va, wq_ref[...], preferred_element_type=jnp.float32) + bq_ref[...]
    ).astype(q_ref.dtype)


def _qnet_duel_fused_jax(x, packed):
    """Same math as the kernel (packed/folded weights), pure XLA fast path."""
    dt = x.dtype
    relu = lambda z: jnp.maximum(z, 0.0)
    h = relu(jnp.dot(x, packed["w1"], preferred_element_type=jnp.float32) + packed["b1"]).astype(dt)
    h = relu(jnp.dot(h, packed["w2"], preferred_element_type=jnp.float32) + packed["b2"]).astype(dt)
    va = relu(jnp.dot(h, packed["w_va1"], preferred_element_type=jnp.float32) + packed["b_va1"]).astype(dt)
    return jnp.dot(va, packed["w_q"], preferred_element_type=jnp.float32) + packed["b_q"]


@functools.partial(jax.jit, static_argnames=("block_b", "min_pallas_batch"))
def qnet_duel_forward(state, packed, *, block_b=2048, min_pallas_batch=128):
    """Dueling Q-net forward.  state: (B, state_dim) float32; packed params."""
    B, S = state.shape
    M = packed["w1"].shape[1]
    A = packed["w_q"].shape[1]
    cdt = packed["w1"].dtype
    x = state.astype(cdt)

    # Tiny batches (e.g. action selection) are pure dispatch overhead for a
    # custom call; let XLA fuse the four small matmuls instead.
    if B < min_pallas_batch:
        return _qnet_duel_fused_jax(x, packed)

    sub = 8 * (4 // jnp.dtype(cdt).itemsize)        # 8 for f32, 16 for bf16
    bm = _pick_bm(B, block_b, _tensorcores_per_chip(), sub)
    grid = (pl.cdiv(B, bm),)                        # ragged last block handled by Pallas

    inv = lambda shape: pl.BlockSpec(shape, lambda i: (0, 0))   # grid-invariant blocks
    in_specs = [
        pl.BlockSpec((bm, S), lambda i: (i, 0)),    # state, tiled over batch
        inv((S, M)), inv((1, M)),                   # head L1
        inv((M, M)), inv((1, M)),                   # head L2
        inv((M, 2 * M)), inv((1, 2 * M)),           # fused val/adv L1
        inv((2 * M, A)), inv((1, A)),               # folded last layer + combine
    ]
    out_spec = pl.BlockSpec((bm, A), lambda i: (i, 0))

    x_bytes = jnp.dtype(cdt).itemsize
    param_bytes = sum(int(v.size) * jnp.dtype(v.dtype).itemsize for v in packed.values())
    cost = pl.CostEstimate(
        flops=2 * B * (S * M + M * M + M * (2 * M) + (2 * M) * A),
        transcendentals=0,
        bytes_accessed=B * (S * x_bytes + A * 4) + param_bytes,
    )

    return pl.pallas_call(
        _qnet_duel_kernel,
        out_shape=jax.ShapeDtypeStruct((B, A), jnp.float32),
        grid_spec=pltpu.PrefetchScalarGridSpec(
            num_scalar_prefetch=0,
            grid=grid,
            in_specs=in_specs,
            out_specs=out_spec,
        ),
        compiler_params=pltpu.CompilerParams(
            dimension_semantics=("parallel",),
        ),
        cost_estimate=cost,
    )(
        x,
        packed["w1"], packed["b1"],
        packed["w2"], packed["b2"],
        packed["w_va1"], packed["b_va1"],
        packed["w_q"], packed["b_q"],
    )


def init_params(key, state_dim, action_dim, mid_dim):
    """Deterministic init (f32). Weights stored as (in, out); biases as (1, out)."""
    ks = jax.random.split(key, 12)

    def lin(kw, kb, fan_in, fan_out):
        # PyTorch Linear default init: U(-1/sqrt(fan_in), 1/sqrt(fan_in)).
        bound = 1.0 / jnp.sqrt(jnp.float32(fan_in))
        w = jax.random.uniform(kw, (fan_in, fan_out), jnp.float32, -bound, bound)
        b = jax.random.uniform(kb, (1, fan_out), jnp.float32, -bound, bound)
        return w, b

    w1, b1 = lin(ks[0], ks[1], state_dim, mid_dim)
    w2, b2 = lin(ks[2], ks[3], mid_dim, mid_dim)
    wv1, bv1 = lin(ks[4], ks[5], mid_dim, mid_dim)
    wv2, bv2 = lin(ks[6], ks[7], mid_dim, 1)
    wa1, ba1 = lin(ks[8], ks[9], mid_dim, mid_dim)
    wa2, ba2 = lin(ks[10], ks[11], mid_dim, action_dim)
    return dict(
        w1=w1, b1=b1, w2=w2, b2=b2,
        wv1=wv1, bv1=bv1, wv2=wv2, bv2=bv2,
        wa1=wa1, ba1=ba1, wa2=wa2, ba2=ba2,
    )


def pack_params(p, dtype=jnp.bfloat16):
    """Fuse the branches AND fold the dueling combine into the weights (exact).

    w_va1 = [wv1 | wa1]                                   (M, 2M)
    w_q   = [[ wv2 broadcast over A columns ],            (2M, A)
             [ wa2 - mean_cols(wa2)         ]]
    b_q   = bv2 + ba2 - mean(ba2)                         (1, A)
    so that  relu(h @ w_va1 + b_va1) @ w_q + b_q
          == val + adv - adv.mean(axis=1, keepdims=True).
    Weights cast to `dtype` (bf16 by default); biases stay f32 (added to the
    f32 MXU accumulator).
    """
    A = p["wa2"].shape[1]
    M = p["wv2"].shape[0]
    w_va1 = jnp.concatenate([p["wv1"], p["wa1"]], axis=1)                 # (M, 2M)
    b_va1 = jnp.concatenate([p["bv1"], p["ba1"]], axis=1)                 # (1, 2M)
    w_q_top = jnp.broadcast_to(p["wv2"], (M, A))                          # value -> every column
    w_q_bot = p["wa2"] - jnp.mean(p["wa2"], axis=1, keepdims=True)        # adv - mean(adv)
    w_q = jnp.concatenate([w_q_top, w_q_bot], axis=0)                     # (2M, A)
    b_q = p["bv2"] + p["ba2"] - jnp.mean(p["ba2"], axis=1, keepdims=True)  # (1, A)

    cast = lambda w: w.astype(dtype)
    f32 = lambda b: b.astype(jnp.float32)
    return dict(
        w1=cast(p["w1"]), b1=f32(p["b1"]),
        w2=cast(p["w2"]), b2=f32(p["b2"]),
        w_va1=cast(w_va1), b_va1=f32(b_va1),
        w_q=cast(w_q), b_q=f32(b_q),
    )


def qnet_duel_reference(state, p):
    """Pure-JAX f32 reference mirroring the PyTorch forward (unpacked params)."""
    relu = lambda z: jnp.maximum(z, 0.0)
    h = relu(state @ p["w1"] + p["b1"])
    h = relu(h @ p["w2"] + p["b2"])
    v = relu(h @ p["wv1"] + p["bv1"]) @ p["wv2"] + p["bv2"]
    a = relu(h @ p["wa1"] + p["ba1"]) @ p["wa2"] + p["ba2"]
    return v + a - a.mean(axis=1, keepdims=True)


if __name__ == "__main__":
    state_dim, action_dim, mid_dim = 16, 4, 32

    key = jax.random.PRNGKey(0)
    k_params, k1, k2, k3 = jax.random.split(key, 4)
    params = init_params(k_params, state_dim, action_dim, mid_dim)
    packed = pack_params(params)   # bf16 weights, f32 biases, combine folded

    TOL = dict(atol=2e-2, rtol=2e-2)   # bf16 MXU inputs (same as default-precision f32 matmul)

    # Small batch forced through the Pallas kernel (action-selection shape).
    s_small = jax.random.normal(k1, (8, state_dim), jnp.float32)
    q_small = jax.block_until_ready(qnet_duel_forward(s_small, packed, min_pallas_batch=0))
    ref_small = qnet_duel_reference(s_small, params)
    assert q_small.shape == (8, action_dim)
    assert jnp.allclose(q_small, ref_small, **TOL), "mismatch vs reference (B=8)"

    # Non-divisible batch through the kernel (exercises the ragged trailing block).
    s_mid = jax.random.normal(k2, (67, state_dim), jnp.float32)
    q_mid = jax.block_until_ready(qnet_duel_forward(s_mid, packed, min_pallas_batch=0))
    assert q_mid.shape == (67, action_dim)
    assert jnp.allclose(q_mid, qnet_duel_reference(s_mid, params), **TOL), \
        "mismatch vs reference (B=67, ragged block)"

    # Training-style batch through the default kernel path.
    s_big = jax.random.normal(k3, (1000, state_dim), jnp.float32)
    q_big = jax.block_until_ready(qnet_duel_forward(s_big, packed))
    assert q_big.shape == (1000, action_dim)
    assert jnp.allclose(q_big, qnet_duel_reference(s_big, params), **TOL), \
        "mismatch vs reference (B=1000)"

    # Tiny batch via the XLA fast path (default min_pallas_batch threshold).
    q_tiny = jax.block_until_ready(qnet_duel_forward(s_small, packed))
    assert jnp.allclose(q_tiny, ref_small, **TOL), "mismatch vs reference (fast path)"

    print("KERNEL_OK")
</pallas_src>

<mosaic_0001>
module attributes {stable_mosaic.version = 11 : i64} {
  func.func @_qnet_duel_kernel(%arg0: i32, %arg1: memref<8x16xbf16, #tpu.memory_space<vmem>>, %arg2: memref<16x32xbf16, #tpu.memory_space<vmem>>, %arg3: memref<1x32xf32, #tpu.memory_space<vmem>>, %arg4: memref<32x32xbf16, #tpu.memory_space<vmem>>, %arg5: memref<1x32xf32, #tpu.memory_space<vmem>>, %arg6: memref<32x64xbf16, #tpu.memory_space<vmem>>, %arg7: memref<1x64xf32, #tpu.memory_space<vmem>>, %arg8: memref<64x4xbf16, #tpu.memory_space<vmem>>, %arg9: memref<1x4xf32, #tpu.memory_space<vmem>>, %arg10: memref<8x4xf32, #tpu.memory_space<vmem>>) attributes {dimension_semantics = [#tpu.dimension_semantics<parallel>], iteration_bounds = array<i64: 1>, scalar_prefetch = 0 : i64, scratch_operands = 0 : i64, tpu.core_type = #tpu.core_type<tc>, window_params = [{transform_indices = @transform_0, window_bounds = array<i64: 8, 16>}, {pipeline_mode = #tpu.pipeline_mode<synchronous>, transform_indices = @transform_1, window_bounds = array<i64: 16, 32>}, {pipeline_mode = #tpu.pipeline_mode<synchronous>, transform_indices = @transform_2, window_bounds = array<i64: 1, 32>}, {pipeline_mode = #tpu.pipeline_mode<synchronous>, transform_indices = @transform_3, window_bounds = array<i64: 32, 32>}, {pipeline_mode = #tpu.pipeline_mode<synchronous>, transform_indices = @transform_4, window_bounds = array<i64: 1, 32>}, {pipeline_mode = #tpu.pipeline_mode<synchronous>, transform_indices = @transform_5, window_bounds = array<i64: 32, 64>}, {pipeline_mode = #tpu.pipeline_mode<synchronous>, transform_indices = @transform_6, window_bounds = array<i64: 1, 64>}, {pipeline_mode = #tpu.pipeline_mode<synchronous>, transform_indices = @transform_7, window_bounds = array<i64: 64, 4>}, {pipeline_mode = #tpu.pipeline_mode<synchronous>, transform_indices = @transform_8, window_bounds = array<i64: 1, 4>}, {transform_indices = @transform_9, window_bounds = array<i64: 8, 4>}]} {
    %c0 = arith.constant 0 : index
    %c0_0 = arith.constant 0 : index
    %0 = vector.load %arg1[%c0, %c0_0] : memref<8x16xbf16, #tpu.memory_space<vmem>>, vector<8x16xbf16>
    %c0_1 = arith.constant 0 : index
    %c0_2 = arith.constant 0 : index
    %1 = vector.load %arg2[%c0_1, %c0_2] : memref<16x32xbf16, #tpu.memory_space<vmem>>, vector<16x32xbf16>
    %cst = arith.constant dense<0.000000e+00> : vector<8x32xf32>
    %2 = tpu.matmul %0, %1, %cst {dimension_numbers = #tpu.dot_dimension_numbers<[1], [0], [0], [1], [0, 0, 1, 1], [], []>} : vector<8x16xbf16>, vector<16x32xbf16>, vector<8x32xf32> -> vector<8x32xf32>
    %c0_3 = arith.constant 0 : index
    %c0_4 = arith.constant 0 : index
    %3 = vector.load %arg3[%c0_3, %c0_4] : memref<1x32xf32, #tpu.memory_space<vmem>>, vector<1x32xf32>
    %4 = vector.broadcast %3 : vector<1x32xf32> to vector<8x32xf32>
    %5 = arith.addf %2, %4 : vector<8x32xf32>
    %cst_5 = arith.constant 0.000000e+00 : f32
    %6 = vector.broadcast %cst_5 : f32 to vector<8x32xf32>
    %7 = arith.maximumf %5, %6 : vector<8x32xf32>
    %8 = arith.truncf %7 : vector<8x32xf32> to vector<8x32xbf16>
    %c0_6 = arith.constant 0 : index
    %c0_7 = arith.constant 0 : index
    %9 = vector.load %arg4[%c0_6, %c0_7] : memref<32x32xbf16, #tpu.memory_space<vmem>>, vector<32x32xbf16>
    %cst_8 = arith.constant dense<0.000000e+00> : vector<8x32xf32>
    %10 = tpu.matmul %8, %9, %cst_8 {dimension_numbers = #tpu.dot_dimension_numbers<[1], [0], [0], [1], [0, 0, 1, 1], [], []>} : vector<8x32xbf16>, vector<32x32xbf16>, vector<8x32xf32> -> vector<8x32xf32>
    %c0_9 = arith.constant 0 : index
    %c0_10 = arith.constant 0 : index
    %11 = vector.load %arg5[%c0_9, %c0_10] : memref<1x32xf32, #tpu.memory_space<vmem>>, vector<1x32xf32>
    %12 = vector.broadcast %11 : vector<1x32xf32> to vector<8x32xf32>
    %13 = arith.addf %10, %12 : vector<8x32xf32>
    %cst_11 = arith.constant 0.000000e+00 : f32
    %14 = vector.broadcast %cst_11 : f32 to vector<8x32xf32>
    %15 = arith.maximumf %13, %14 : vector<8x32xf32>
    %16 = arith.truncf %15 : vector<8x32xf32> to vector<8x32xbf16>
    %c0_12 = arith.constant 0 : index
    %c0_13 = arith.constant 0 : index
    %17 = vector.load %arg6[%c0_12, %c0_13] : memref<32x64xbf16, #tpu.memory_space<vmem>>, vector<32x64xbf16>
    %cst_14 = arith.constant dense<0.000000e+00> : vector<8x64xf32>
    %18 = tpu.matmul %16, %17, %cst_14 {dimension_numbers = #tpu.dot_dimension_numbers<[1], [0], [0], [1], [0, 0, 1, 1], [], []>} : vector<8x32xbf16>, vector<32x64xbf16>, vector<8x64xf32> -> vector<8x64xf32>
    %c0_15 = arith.constant 0 : index
    %c0_16 = arith.constant 0 : index
    %19 = vector.load %arg7[%c0_15, %c0_16] : memref<1x64xf32, #tpu.memory_space<vmem>>, vector<1x64xf32>
    %20 = vector.broadcast %19 : vector<1x64xf32> to vector<8x64xf32>
    %21 = arith.addf %18, %20 : vector<8x64xf32>
    %cst_17 = arith.constant 0.000000e+00 : f32
    %22 = vector.broadcast %cst_17 : f32 to vector<8x64xf32>
    %23 = arith.maximumf %21, %22 : vector<8x64xf32>
    %24 = arith.truncf %23 : vector<8x64xf32> to vector<8x64xbf16>
    %c0_18 = arith.constant 0 : index
    %c0_19 = arith.constant 0 : index
    %25 = vector.load %arg8[%c0_18, %c0_19] : memref<64x4xbf16, #tpu.memory_space<vmem>>, vector<64x4xbf16>
    %cst_20 = arith.constant dense<0.000000e+00> : vector<8x4xf32>
    %26 = tpu.matmul %24, %25, %cst_20 {dimension_numbers = #tpu.dot_dimension_numbers<[1], [0], [0], [1], [0, 0, 1, 1], [], []>} : vector<8x64xbf16>, vector<64x4xbf16>, vector<8x4xf32> -> vector<8x4xf32>
    %c0_21 = arith.constant 0 : index
    %c0_22 = arith.constant 0 : index
    %27 = vector.load %arg9[%c0_21, %c0_22] : memref<1x4xf32, #tpu.memory_space<vmem>>, vector<1x4xf32>
    %28 = vector.broadcast %27 : vector<1x4xf32> to vector<8x4xf32>
    %29 = arith.addf %26, %28 : vector<8x4xf32>
    %c0_23 = arith.constant 0 : index
    %c0_24 = arith.constant 0 : index
    %30 = vector.load %arg10[%c0_23, %c0_24] : memref<8x4xf32, #tpu.memory_space<vmem>>, vector<8x4xf32>
    tpu.vector_store %arg10[%c0_23, %c0_24], %29 {strides = array<i32>} : memref<8x4xf32, #tpu.memory_space<vmem>>, vector<8x4xf32>,
    return
  }
  func.func @transform_0(%arg0: i32) -> (i32, i32) {
    %c0_i32 = arith.constant 0 : i32
    %c0_i32_0 = arith.constant 0 : i32
    return %arg0, %c0_i32 : i32, i32
  }
  func.func @transform_1(%arg0: i32) -> (i32, i32) {
    %c0_i32 = arith.constant 0 : i32
    %c0_i32_0 = arith.constant 0 : i32
    %c0_i32_1 = arith.constant 0 : i32
    return %c0_i32, %c0_i32_0 : i32, i32
  }
  func.func @transform_2(%arg0: i32) -> (i32, i32) {
    %c0_i32 = arith.constant 0 : i32
    %c0_i32_0 = arith.constant 0 : i32
    %c0_i32_1 = arith.constant 0 : i32
    return %c0_i32, %c0_i32_0 : i32, i32
  }
  func.func @transform_3(%arg0: i32) -> (i32, i32) {
    %c0_i32 = arith.constant 0 : i32
    %c0_i32_0 = arith.constant 0 : i32
    %c0_i32_1 = arith.constant 0 : i32
    return %c0_i32, %c0_i32_0 : i32, i32
  }
  func.func @transform_4(%arg0: i32) -> (i32, i32) {
    %c0_i32 = arith.constant 0 : i32
    %c0_i32_0 = arith.constant 0 : i32
    %c0_i32_1 = arith.constant 0 : i32
    return %c0_i32, %c0_i32_0 : i32, i32
  }
  func.func @transform_5(%arg0: i32) -> (i32, i32) {
    %c0_i32 = arith.constant 0 : i32
    %c0_i32_0 = arith.constant 0 : i32
    %c0_i32_1 = arith.constant 0 : i32
    return %c0_i32, %c0_i32_0 : i32, i32
  }
  func.func @transform_6(%arg0: i32) -> (i32, i32) {
    %c0_i32 = arith.constant 0 : i32
    %c0_i32_0 = arith.constant 0 : i32
    %c0_i32_1 = arith.constant 0 : i32
    return %c0_i32, %c0_i32_0 : i32, i32
  }
  func.func @transform_7(%arg0: i32) -> (i32, i32) {
    %c0_i32 = arith.constant 0 : i32
    %c0_i32_0 = arith.constant 0 : i32
    %c0_i32_1 = arith.constant 0 : i32
    return %c0_i32, %c0_i32_0 : i32, i32
  }
  func.func @transform_8(%arg0: i32) -> (i32, i32) {
    %c0_i32 = arith.constant 0 : i32
    %c0_i32_0 = arith.constant 0 : i32
    %c0_i32_1 = arith.constant 0 : i32
    return %c0_i32, %c0_i32_0 : i32, i32
  }
  func.func @transform_9(%arg0: i32) -> (i32, i32) {
    %c0_i32 = arith.constant 0 : i32
    %c0_i32_0 = arith.constant 0 : i32
    return %arg0, %c0_i32 : i32, i32
  }
}

</mosaic_0001>

<llo_original>
// kernel: qnet_duel_forward.1
$region0: #{qnet_duel_forward.1}
  #allocation0 [shape = 'u32[]', space=smem, size = 0x4, offset = 0x4, fixed_abs, tag = 'smem constant byte address 0x4 - core index']
  #allocation1 [shape = 'u32[72,128]{1,0:T(1,128)}', space=vmem, size = 0x9000, scoped, tag = 'internal scratch']
  %s0 = inlined_call_operand.vmem [shape: bf16[8,16], index: 0, kind: input, shape index: {}]
  %s1 = inlined_call_operand.vmem [shape: bf16[16,32], index: 1, kind: input, shape index: {}]
  %s2 = inlined_call_operand.vmem [shape: f32[1,32], index: 2, kind: input, shape index: {}]
  %s3 = inlined_call_operand.vmem [shape: bf16[32,32], index: 3, kind: input, shape index: {}]
  %s4 = inlined_call_operand.vmem [shape: f32[1,32], index: 4, kind: input, shape index: {}]
  %s5 = inlined_call_operand.vmem [shape: bf16[32,64], index: 5, kind: input, shape index: {}]
  %s6 = inlined_call_operand.vmem [shape: f32[1,64], index: 6, kind: input, shape index: {}]
  %s7 = inlined_call_operand.vmem [shape: bf16[64,4], index: 7, kind: input, shape index: {}]
  %s8 = inlined_call_operand.vmem [shape: f32[1,4], index: 8, kind: input, shape index: {}]
  %s9 = inlined_call_operand.vmem [shape: f32[8,4], index: 9, kind: output, shape index: {}]
  %s10 = sld [smem:[#allocation0]]
  $region46: #{qnet_duel_forward.1} parent=0
    _
  %s12 = ssub.s32 1, %s10
  %s13 = scalar_select 0, %s12, %s10
  // Predicated region
  $region2: #{qnet_duel_forward.1} parent=0 // pred_check
    _
  $region3: #{qnet_duel_forward.1} parent=0 // pred_check_branch
    %15 = sbr.rel (0) target = $region5
  $region4: #{qnet_duel_forward.1} parent=0 // pred_region
    _
  $region5: #{qnet_duel_forward.1} parent=0 // pred_fallthru
    _
  // Predicated region
  $region6: #{qnet_duel_forward.1} parent=0 // pred_check
    _
  $region7: #{qnet_duel_forward.1} parent=0 // pred_check_branch
    %17 = sbr.rel (0) target = $region9
  $region8: #{qnet_duel_forward.1} parent=0 // pred_region
    _
  $region9: #{qnet_duel_forward.1} parent=0 // pred_fallthru
    _
  // Predicated region
  $region10: #{qnet_duel_forward.1} parent=0 // pred_check
    _
  $region11: #{qnet_duel_forward.1} parent=0 // pred_check_branch
    %19 = sbr.rel (0) target = $region13
  $region12: #{qnet_duel_forward.1} parent=0 // pred_region
    _
  $region13: #{qnet_duel_forward.1} parent=0 // pred_fallthru
    _
  // Predicated region
  $region14: #{qnet_duel_forward.1} parent=0 // pred_check
    _
  $region15: #{qnet_duel_forward.1} parent=0 // pred_check_branch
    %21 = sbr.rel (0) target = $region17
  $region16: #{qnet_duel_forward.1} parent=0 // pred_region
    _
  $region17: #{qnet_duel_forward.1} parent=0 // pred_fallthru
    _
  // Predicated region
  $region18: #{qnet_duel_forward.1} parent=0 // pred_check
    _
  $region19: #{qnet_duel_forward.1} parent=0 // pred_check_branch
    %23 = sbr.rel (0) target = $region21
  $region20: #{qnet_duel_forward.1} parent=0 // pred_region
    _
  $region21: #{qnet_duel_forward.1} parent=0 // pred_fallthru
    _
  // Predicated region
  $region22: #{qnet_duel_forward.1} parent=0 // pred_check
    _
  $region23: #{qnet_duel_forward.1} parent=0 // pred_check_branch
    %25 = sbr.rel (0) target = $region25
  $region24: #{qnet_duel_forward.1} parent=0 // pred_region
    _
  $region25: #{qnet_duel_forward.1} parent=0 // pred_fallthru
    _
  // Predicated region
  $region26: #{qnet_duel_forward.1} parent=0 // pred_check
    _
  $region27: #{qnet_duel_forward.1} parent=0 // pred_check_branch
    %27 = sbr.rel (0) target = $region29
  $region28: #{qnet_duel_forward.1} parent=0 // pred_region
    _
  $region29: #{qnet_duel_forward.1} parent=0 // pred_fallthru
    _
  // Predicated region
  $region30: #{qnet_duel_forward.1} parent=0 // pred_check
    _
  $region31: #{qnet_duel_forward.1} parent=0 // pred_check_branch
    %29 = sbr.rel (0) target = $region33
  $region32: #{qnet_duel_forward.1} parent=0 // pred_region
    _
  $region33: #{qnet_duel_forward.1} parent=0 // pred_fallthru
    _
  // Predicated region
  $region34: #{qnet_duel_forward.1} parent=0 // pred_check
    _
  $region35: #{qnet_duel_forward.1} parent=0 // pred_check_branch
    %31 = sbr.rel (0) target = $region37
  $region36: #{qnet_duel_forward.1} parent=0 // pred_region
    _
  $region37: #{qnet_duel_forward.1} parent=0 // pred_fallthru
    _
  %v33 = vld [vmem:[%s0] sm:$0xf]
  %v34 = vld [vmem:[%s1] sm:$0xf]
  %v35 = vld [vmem:[%s1 + $0x4] sm:$0xf]
  %v36 = vld [vmem:[%s2] sm:$0x1]
  %v38 = vperm.slane %v36, 0
  %v42 = vunpack.c.l.b16 %v34
  %v43 = vunpack.c.l.b16 %v35
  %v44 = vpack.c.b16 %v43, %v42
  %vm46 = vcmask 130048
  %v48 = vsel %vm46, %v33, 0
  %50 = vmatpush.bf16.msra.mxu0 0
  %51 = vmatpush.bf16.msra.mxu0 0
  %52 = vmatpush.bf16.msra.mxu0 0
  %53 = vmatpush.bf16.msra.mxu0 0
  %54 = vmatpush.bf16.msra.mxu0 0
  %55 = vmatpush.bf16.msra.mxu0 0
  %56 = vmatpush.bf16.msra.mxu0 0
  %57 = vmatpush.bf16.msra.mxu0 %v44
  %58 = vmatmul.bf16.gmra.mxu0 %v48
  %v59 = vpop.f32.mrf.mxu0
  %v60 = vadd.f32 %v38, %v59
  %v61 = vpop.f32.mrf.mxu0
  %62 = vdwg.mxu0
  %v63 = vmax.f32 %v60, 0.0
  %v64 = vpack.c.bf16 %v63, %v63
  %v65 = vld [vmem:[%s3] sm:$0xf]
  %v66 = vld [vmem:[%s3 + $0x4] sm:$0xf]
  %v67 = vld [vmem:[%s3 + $0x8] sm:$0xf]
  %v68 = vld [vmem:[%s3 + $0xc] sm:$0xf]
  %v69 = vld [vmem:[%s4] sm:$0x1]
  %v71 = vperm.slane %v69, 0
  %v77 = vunpack.c.l.b16 %v65
  %v78 = vunpack.c.l.b16 %v66
  %v79 = vunpack.c.l.b16 %v67
  %v80 = vunpack.c.l.b16 %v68
  %v81 = vpack.c.b16 %v78, %v77
  %v82 = vpack.c.b16 %v80, %v79
  %vm85 = vcmask 261120
  %v87 = vsel %vm85, %v64, 0
  %89 = vmatpush.bf16.msra.mxu0 0
  %90 = vmatpush.bf16.msra.mxu0 0
  %91 = vmatpush.bf16.msra.mxu0 0
  %92 = vmatpush.bf16.msra.mxu0 0
  %93 = vmatpush.bf16.msra.mxu0 0
  %94 = vmatpush.bf16.msra.mxu0 0
  %95 = vmatpush.bf16.msra.mxu0 %v82
  %96 = vmatpush.bf16.msra.mxu0 %v81
  %97 = vmatmul.bf16.gmra.mxu0 %v87
  %v98 = vpop.f32.mrf.mxu0
  %v99 = vadd.f32 %v71, %v98
  %v100 = vpop.f32.mrf.mxu0
  %101 = vdwg.mxu0
  %v102 = vmax.f32 %v99, 0.0
  %v103 = vpack.c.bf16 %v102, %v102
  %v104 = vld [vmem:[%s5] sm:$0xf]
  %v105 = vld [vmem:[%s5 + $0x4] sm:$0xf]
  %v106 = vld [vmem:[%s5 + $0x8] sm:$0xf]
  %v107 = vld [vmem:[%s5 + $0xc] sm:$0xf]
  %v108 = vld [vmem:[%s6] sm:$0x1]
  %v110 = vperm.slane %v108, 0
  %v116 = vunpack.c.l.b16 %v104
  %v117 = vunpack.c.l.b16 %v105
  %v118 = vunpack.c.l.b16 %v106
  %v119 = vunpack.c.l.b16 %v107
  %v120 = vpack.c.b16 %v117, %v116
  %v121 = vpack.c.b16 %v119, %v118
  %v125 = vsel %vm85, %v103, 0
  %127 = vmatpush.bf16.msra.mxu0 0
  %128 = vmatpush.bf16.msra.mxu0 0
  %129 = vmatpush.bf16.msra.mxu0 0
  %130 = vmatpush.bf16.msra.mxu0 0
  %131 = vmatpush.bf16.msra.mxu0 0
  %132 = vmatpush.bf16.msra.mxu0 0
  %133 = vmatpush.bf16.msra.mxu0 %v121
  %134 = vmatpush.bf16.msra.mxu0 %v120
  %135 = vmatmul.bf16.gmra.mxu0 %v125
  %v136 = vpop.f32.mrf.mxu0
  %v137 = vadd.f32 %v110, %v136
  %v138 = vpop.f32.mrf.mxu0
  %139 = vdwg.mxu0
  %v140 = vmax.f32 %v137, 0.0
  %v141 = vpack.c.bf16 %v140, %v140
  %v142 = vld [vmem:[%s7] sm:$0xf]
  %v143 = vld [vmem:[%s7 + $0x4] sm:$0xf]
  %v144 = vld [vmem:[%s7 + $0x8] sm:$0xf]
  %v145 = vld [vmem:[%s7 + $0xc] sm:$0xf]
  %v146 = vld [vmem:[%s7 + $0x10] sm:$0xf]
  %v147 = vld [vmem:[%s7 + $0x14] sm:$0xf]
  %v148 = vld [vmem:[%s7 + $0x18] sm:$0xf]
  %v149 = vld [vmem:[%s7 + $0x1c] sm:$0xf]
  %v150 = vld [vmem:[%s8] sm:$0x1]
  %v152 = vperm.slane %v150, 0
  %v162 = vunpack.c.l.b16 %v142
  %v163 = vunpack.c.l.b16 %v143
  %v164 = vunpack.c.l.b16 %v144
  %v165 = vunpack.c.l.b16 %v145
  %v166 = vunpack.c.l.b16 %v146
  %v167 = vunpack.c.l.b16 %v147
  %v168 = vunpack.c.l.b16 %v148
  %v169 = vunpack.c.l.b16 %v149
  %v170 = vpack.c.b16 %v163, %v162
  %v171 = vpack.c.b16 %v165, %v164
  %v172 = vpack.c.b16 %v167, %v166
  %v173 = vpack.c.b16 %v169, %v168
  %vm178 = vcmask 523264
  %v180 = vsel %vm178, %v141, 0
  %182 = vmatpush.bf16.msra.mxu0 0
  %183 = vmatpush.bf16.msra.mxu0 0
  %184 = vmatpush.bf16.msra.mxu0 0
  %185 = vmatpush.bf16.msra.mxu0 0
  %186 = vmatpush.bf16.msra.mxu0 %v173
  %187 = vmatpush.bf16.msra.mxu0 %v172
  %188 = vmatpush.bf16.msra.mxu0 %v171
  %189 = vmatpush.bf16.msra.mxu0 %v170
  %190 = vmatmul.bf16.gmra.mxu0 %v180
  %v191 = vpop.f32.mrf.mxu0
  %v192 = vadd.f32 %v152, %v191
  %v193 = vpop.f32.mrf.mxu0
  %194 = vdwg.mxu0
  %vm195 = vcmask 31744
  %196 = vst.msk [vmem:[%s9] sm:$0xff] %vm195, %v192
  // Predicated region
  $region38: #{qnet_duel_forward.1} parent=0 // pred_check
    _
  $region39: #{qnet_duel_forward.1} parent=0 // pred_check_branch
    %198 = sbr.rel (0) target = $region41
  $region40: #{qnet_duel_forward.1} parent=0 // pred_region
    _
  $region41: #{qnet_duel_forward.1} parent=0 // pred_fallthru
    _
  // Predicated region
  $region42: #{qnet_duel_forward.1} parent=0 // pred_check
    _
  $region43: #{qnet_duel_forward.1} parent=0 // pred_check_branch
    %200 = sbr.rel (0) target = $region45
  $region44: #{qnet_duel_forward.1} parent=0 // pred_region
    _
  $region45: #{qnet_duel_forward.1} parent=0 // pred_fallthru
    _

</llo_original>
